<compile_context>
chip_gen: v6e
topology: v6e:2x2x1
jax: 0.10.0
libtpu: 0.0.40
codegen_flags: <defaults>
</compile_context>

<pallas_src>
import functools

import jax
import jax.numpy as jnp
from jax import lax
from jax.experimental import pallas as pl
from jax.experimental.pallas import tpu as pltpu


_SENTINEL = -1e30  # large finite "minus infinity"; representable in bf16, no NaN hazard.


# --------------------------------------------------------------------------------------
# Kernel
# --------------------------------------------------------------------------------------
def _regressor_kernel(enc_ref, mask_ref, w_ref, b_ref, out_ref, acc_ref, *,
                      compute_dtype, reduce_chunk):
    # enc_ref:  (st, bt, W)  encoded tile, native dtype (f32 / bf16 / ...)
    # mask_ref: (st, bt, 1)  int8/int32; nonzero => masked out
    # w_ref:    (1, W)       f32 (nn.Linear weight row)
    # b_ref:    (1, 1)       f32
    # out_ref:  (bt, 1)      f32
    # acc_ref:  (bt, W)      f32 running max, resident across the seq grid axis
    s = pl.program_id(1)
    st = enc_ref.shape[0]

    @pl.when(s == 0)
    def _init():
        acc_ref[...] = jnp.full(acc_ref.shape, _SENTINEL, acc_ref.dtype)

    neg = jnp.array(_SENTINEL, dtype=compute_dtype)

    def _fold(i, acc):
        # Chunked streaming reduction over the seq rows of this block: keeps live vector
        # values to <= ~64 KiB instead of one giant (st, bt, W) temporary.
        base = pl.multiple_of(i * reduce_chunk, reduce_chunk)
        e = enc_ref[pl.ds(base, reduce_chunk)]              # (R, bt, W)
        if e.dtype != compute_dtype:
            e = e.astype(compute_dtype)                     # f32 upcast only where needed
        keep = mask_ref[pl.ds(base, reduce_chunk)] == 0     # (R, bt, 1) -> lane broadcast
        chunk_max = jnp.max(jnp.where(keep, e, neg), axis=0)  # (bt, W)
        return jnp.maximum(acc, chunk_max.astype(acc.dtype))

    acc_ref[...] = lax.fori_loop(0, st // reduce_chunk, _fold, acc_ref[...])

    @pl.when(s == pl.num_programs(1) - 1)
    def _finalize():
        pooled = acc_ref[...]                               # (bt, W) f32
        # Linear(W -> 1) as VPU multiply + lane reduce (no MXU, no weight transpose).
        logits = jnp.sum(pooled * w_ref[...], axis=-1, keepdims=True) + b_ref[...]
        out_ref[...] = jax.nn.sigmoid(logits).astype(out_ref.dtype)


# --------------------------------------------------------------------------------------
# Chip introspection + tile sizing
# --------------------------------------------------------------------------------------
def _device_kind():
    try:
        return jax.devices()[0].device_kind.lower()
    except Exception:
        return ""


def _chip_generation():
    kind = _device_kind()
    for g in (7, 6, 5, 4, 3, 2):
        if str(g) in kind:
            return g
    return 0


def _tpu_vmem_capacity_bytes(gen):
    try:
        cap = int(getattr(pltpu.get_tpu_info(), "vmem_capacity_bytes", 0) or 0)
        if cap > 0:
            return cap
    except Exception:
        pass
    # Fallback by generation: v5e/v6e have 128 MiB per TC, v7x only 64 MiB; be conservative
    # for unknown chips.
    if gen in (5, 6):
        return 128 << 20
    return 64 << 20


def _round_up(x, m):
    return (x + m - 1) // m * m


def _pick_batch_tile(B, W, enc_itemsize, override=None):
    """Batch tile: divisor of B, layout-friendly, bt*W*4 <= ~128 KiB, and (when possible)
    bt <= B/2 so the leading 'parallel' grid axis has >= 2 steps for v7x's two TensorCores."""
    if override is not None:
        assert B % override == 0 and (override % 8 == 0 or override == B), (override, B)
        return override
    # Sublane granularity covering the encoded dtype's native tiling (8 f32 / 16 bf16 / 32 i8).
    gran = 8 if enc_itemsize >= 4 else (16 if enc_itemsize == 2 else 32)
    cap = max(gran, (128 * 1024) // (4 * W))          # keep (bt, W) f32 accumulator <= 128 KiB
    cands = [d for d in range(gran, B + 1, gran) if B % d == 0 and d <= cap]
    if not cands:
        return B                                      # small/odd B: single full-B tile
    half = [d for d in cands if 2 * d <= B]           # prefer nb >= 2 (megacore)
    return max(half) if half else max(cands)


def _mask_row_bytes(bt, mask_itemsize):
    """Padded VMEM bytes of one (bt, 1) mask slab (lane dim pads to 128, sublanes to the
    dtype's native tile)."""
    sub_tile = 8 * (4 // mask_itemsize)               # 8 rows for int32, 32 rows for int8
    return _round_up(max(bt, 1), sub_tile) * 128 * mask_itemsize


def _pick_seq_tile(S, bt, W, enc_itemsize, mask_itemsize, budget_bytes):
    """Largest divisor of S whose *real* per-step VMEM footprint fits the budget:
    2 pipeline buffers x (encoded + padded mask) + accumulator + ~1 MiB temporaries."""
    per_row = 2 * bt * W * enc_itemsize + 2 * _mask_row_bytes(bt, mask_itemsize)
    fixed = bt * W * 4 + (1 << 20)
    cap = max(1, min(S, (budget_bytes - fixed) // per_row))
    for st in range(int(cap), 0, -1):
        if S % st == 0:
            return st
    return 1


def _pick_reduce_chunk(st, bt, W):
    """Seq rows folded per fori_loop iteration; keep each chunk's values <= ~64 KiB."""
    cap = max(1, (64 * 1024) // (bt * W * 4))
    best = 1
    for r in range(1, min(st, cap) + 1):
        if st % r == 0:
            best = r
    return best


# --------------------------------------------------------------------------------------
# Wrapper
# --------------------------------------------------------------------------------------
def basic_regressor(encoded, sent_mask, weight, bias, *, batch_tile=None, seq_tile_rows=None):
    """encoded: (S, B, W); sent_mask: (B, S) bool (True => masked); weight: (1, W); bias: (1,).

    Returns prediction of shape (B,) f32, matching BasicRegressor.forward.
    """
    S, B, W = encoded.shape
    enc_itemsize = jnp.dtype(encoded.dtype).itemsize

    gen = _chip_generation()
    vmem_cap = _tpu_vmem_capacity_bytes(gen)
    # v5e/v6e (128 MiB physical): 64 MiB scoped limit; v7x (64 MiB physical): 48 MiB.
    vmem_limit = (48 << 20) if (vmem_cap <= (64 << 20) or gen >= 7) else (64 << 20)
    vmem_limit = min(vmem_limit, max(32 << 20, int(0.75 * vmem_cap)))
    budget = int(0.8 * vmem_limit)                        # ~20% headroom

    # bf16 elementwise path on v6e/v7x; f32 upcast on v5e/older/unknown (no bf16 VALU there).
    if encoded.dtype == jnp.bfloat16 and gen >= 6:
        compute_dtype = jnp.bfloat16
    else:
        compute_dtype = jnp.float32

    bt = _pick_batch_tile(B, W, enc_itemsize, batch_tile)
    # int8 mask when the batch tile matches int8's native sublane tiling; otherwise int32
    # (same block-layout class as the proven f32 path).
    mask_dtype = jnp.int8 if (bt % 32 == 0) else jnp.int32
    mask_itemsize = jnp.dtype(mask_dtype).itemsize

    if seq_tile_rows is not None:
        assert S % seq_tile_rows == 0, (seq_tile_rows, S)
        st = seq_tile_rows
    else:
        st = _pick_seq_tile(S, bt, W, enc_itemsize, mask_itemsize, budget)
    rc = _pick_reduce_chunk(st, bt, W)

    nb, ns = B // bt, S // st
    assert nb * bt == B and ns * st == S

    # Compact integer mask, (S, B, 1) so it broadcasts across W on the (cheap) lane axis.
    mask3 = sent_mask.T.astype(mask_dtype)[..., None]
    w2d = weight.reshape(1, W).astype(jnp.float32)
    b2d = bias.reshape(1, 1).astype(jnp.float32)

    kern = functools.partial(_regressor_kernel, compute_dtype=compute_dtype, reduce_chunk=rc)

    grid_spec = pltpu.PrefetchScalarGridSpec(
        num_scalar_prefetch=0,
        grid=(nb, ns),                                      # (batch tiles, seq tiles)
        in_specs=[
            pl.BlockSpec((st, bt, W), lambda b, s: (s, b, 0)),   # encoded tile
            pl.BlockSpec((st, bt, 1), lambda b, s: (s, b, 0)),   # integer mask tile
            pl.BlockSpec((1, W), lambda b, s: (0, 0)),           # weight (resident)
            pl.BlockSpec((1, 1), lambda b, s: (0, 0)),           # bias (resident)
        ],
        out_specs=pl.BlockSpec((bt, 1), lambda b, s: (b, 0)),    # resident across seq axis
        scratch_shapes=[pltpu.VMEM((bt, W), jnp.float32)],       # running-max accumulator
    )

    out = pl.pallas_call(
        kern,
        out_shape=jax.ShapeDtypeStruct((B, 1), jnp.float32),
        grid_spec=grid_spec,
        compiler_params=pltpu.CompilerParams(
            dimension_semantics=("parallel", "arbitrary"),
            vmem_limit_bytes=vmem_limit,
        ),
        cost_estimate=pl.CostEstimate(
            flops=3 * S * B * W,                     # select + max + mul/add contraction
            transcendentals=B,                       # sigmoid
            bytes_accessed=S * B * W * enc_itemsize + S * B * mask_itemsize + B * 4 + W * 4,
        ),
    )(encoded, mask3, w2d, b2d)

    return out[:, 0]  # squeeze(-1)


# --------------------------------------------------------------------------------------
# Reference + tests
# --------------------------------------------------------------------------------------
def _reference(encoded, sent_mask, weight, bias):
    masked = jnp.where(sent_mask.T[..., None], -jnp.inf, encoded.astype(jnp.float32))
    pooled = jnp.max(masked, axis=0)                                       # (B, W)
    logits = jnp.sum(pooled * weight[0].astype(jnp.float32), axis=-1) + bias[0].astype(jnp.float32)
    return jax.nn.sigmoid(logits)


def _make_inputs(key, S, B, W, dtype):
    k_enc, k_mask, k_w, k_b = jax.random.split(key, 4)
    encoded = jax.random.normal(k_enc, (S, B, W), dtype=jnp.float32).astype(dtype)
    sent_mask = jax.random.bernoulli(k_mask, p=0.3, shape=(B, S))
    sent_mask = sent_mask.at[:, 0].set(False)   # >= 1 unmasked position per batch row
    bound = 1.0 / (W ** 0.5)
    weight = jax.random.uniform(k_w, (1, W), minval=-bound, maxval=bound, dtype=jnp.float32)
    bias = jax.random.uniform(k_b, (1,), minval=-bound, maxval=bound, dtype=jnp.float32)
    return encoded, sent_mask, weight, bias


if __name__ == "__main__":
    key = jax.random.PRNGKey(0)
    k1, k2, k3 = jax.random.split(key, 3)

    # Case 1: small shapes from the module spec (single grid step, int32 mask path).
    enc, m, w, b = _make_inputs(k1, 8, 2, 32, jnp.float32)
    pred = jax.block_until_ready(basic_regressor(enc, m, w, b))
    ref = _reference(enc, m, w, b)
    assert pred.shape == (2,)
    assert jnp.allclose(pred, ref, atol=1e-5, rtol=1e-5), (pred, ref)

    # Case 2: multi-tile grid (nb=2, ns=4), int8 mask path, chunked in-kernel reduction.
    enc, m, w, b = _make_inputs(k2, 128, 64, 128, jnp.float32)
    pred = jax.block_until_ready(
        basic_regressor(enc, m, w, b, batch_tile=32, seq_tile_rows=32))
    ref = _reference(enc, m, w, b)
    assert pred.shape == (64,)
    assert jnp.allclose(pred, ref, atol=1e-5, rtol=1e-5), (pred, ref)

    # Case 3: bf16 encoded (bf16 elementwise path on v6e/v7x, f32 upcast elsewhere).
    enc, m, w, b = _make_inputs(k3, 64, 32, 128, jnp.bfloat16)
    pred = jax.block_until_ready(basic_regressor(enc, m, w, b))
    ref = _reference(enc, m, w, b)
    assert pred.shape == (32,)
    assert jnp.allclose(pred, ref, atol=1e-4, rtol=1e-4), (pred, ref)

    print("KERNEL_OK")
</pallas_src>

<mosaic_0001>
module attributes {stable_mosaic.version = 11 : i64} {
  func.func @_regressor_kernel(%arg0: i32, %arg1: i32, %arg2: memref<8x2x32xf32, #tpu.memory_space<vmem>>, %arg3: memref<8x2x1xi32, #tpu.memory_space<vmem>>, %arg4: memref<1x32xf32, #tpu.memory_space<vmem>>, %arg5: memref<1x1xf32, #tpu.memory_space<vmem>>, %arg6: memref<2x1xf32, #tpu.memory_space<vmem>>, %arg7: memref<2x32xf32, #tpu.memory_space<vmem>>) attributes {dimension_semantics = [#tpu.dimension_semantics<parallel>, #tpu.dimension_semantics<arbitrary>], iteration_bounds = array<i64: 1, 1>, scalar_prefetch = 0 : i64, scratch_operands = 1 : i64, tpu.core_type = #tpu.core_type<tc>, window_params = [{transform_indices = @transform_0, window_bounds = array<i64: 8, 2, 32>}, {transform_indices = @transform_1, window_bounds = array<i64: 8, 2, 1>}, {pipeline_mode = #tpu.pipeline_mode<synchronous>, transform_indices = @transform_2, window_bounds = array<i64: 1, 32>}, {pipeline_mode = #tpu.pipeline_mode<synchronous>, transform_indices = @transform_3, window_bounds = array<i64: 1, 1>}, {transform_indices = @transform_4, window_bounds = array<i64: 2, 1>}]} {
    %c0_i32 = arith.constant 0 : i32
    %0 = arith.cmpi eq, %arg1, %c0_i32 : i32
    %1 = arith.extui %0 : i1 to i32
    %c0_i32_0 = arith.constant 0 : i32
    %2 = arith.cmpi ne, %1, %c0_i32_0 : i32
    scf.if %2 {
      %cst_13 = arith.constant -1.000000e+30 : f32
      %22 = vector.broadcast %cst_13 : f32 to vector<2x32xf32>
      %c0_14 = arith.constant 0 : index
      %c0_15 = arith.constant 0 : index
      %23 = vector.load %arg7[%c0_14, %c0_15] : memref<2x32xf32, #tpu.memory_space<vmem>>, vector<2x32xf32>
      tpu.vector_store %arg7[%c0_14, %c0_15], %22 {strides = array<i32>} : memref<2x32xf32, #tpu.memory_space<vmem>>, vector<2x32xf32>,
    } else {
    }
    %c0 = arith.constant 0 : index
    %c0_1 = arith.constant 0 : index
    %3 = vector.load %arg7[%c0, %c0_1] : memref<2x32xf32, #tpu.memory_space<vmem>>, vector<2x32xf32>
    %cst = arith.constant -1.000000e+30 : f32
    %c0_i32_2 = arith.constant 0 : i32
    %c8_i32 = arith.constant 8 : i32
    %4 = arith.muli %c0_i32_2, %c8_i32 : i32
    %5 = tpu.assume_multiple %4, 8 : i32
    %6 = arith.index_cast %5 : i32 to index
    %c0_3 = arith.constant 0 : index
    %c0_4 = arith.constant 0 : index
    %7 = vector.load %arg2[%6, %c0_3, %c0_4] : memref<8x2x32xf32, #tpu.memory_space<vmem>>, vector<8x2x32xf32>
    %8 = arith.index_cast %5 : i32 to index
    %c0_5 = arith.constant 0 : index
    %c0_6 = arith.constant 0 : index
    %9 = vector.load %arg3[%8, %c0_5, %c0_6] : memref<8x2x1xi32, #tpu.memory_space<vmem>>, vector<8x2x1xi32>
    %c0_i32_7 = arith.constant 0 : i32
    %10 = vector.broadcast %c0_i32_7 : i32 to vector<8x2x1xi32>
    %11 = arith.cmpi eq, %9, %10 : vector<8x2x1xi32>
    %12 = vector.shape_cast %11 : vector<8x2x1xi1> to vector<8x2x1xi1>
    %13 = vector.broadcast %12 : vector<8x2x1xi1> to vector<8x2x32xi1>
    %14 = vector.broadcast %cst : f32 to vector<8x2x32xf32>
    %15 = arith.select %13, %7, %14 : vector<8x2x32xi1>, vector<8x2x32xf32>
    %cst_8 = arith.constant dense<0xFF800000> : vector<2x32xf32>
    %16 = vector.multi_reduction <maximumf>, %15, %cst_8 [0] : vector<8x2x32xf32> to vector<2x32xf32>
    %17 = arith.maximumf %3, %16 : vector<2x32xf32>
    %c1_i32 = arith.constant 1 : i32
    %c0_9 = arith.constant 0 : index
    %c0_10 = arith.constant 0 : index
    %18 = vector.load %arg7[%c0_9, %c0_10] : memref<2x32xf32, #tpu.memory_space<vmem>>, vector<2x32xf32>
    tpu.vector_store %arg7[%c0_9, %c0_10], %17 {strides = array<i32>} : memref<2x32xf32, #tpu.memory_space<vmem>>, vector<2x32xf32>,
    %c0_i32_11 = arith.constant 0 : i32
    %19 = arith.cmpi eq, %arg1, %c0_i32_11 : i32
    %20 = arith.extui %19 : i1 to i32
    %c0_i32_12 = arith.constant 0 : i32
    %21 = arith.cmpi ne, %20, %c0_i32_12 : i32
    scf.if %21 {
      %c0_13 = arith.constant 0 : index
      %c0_14 = arith.constant 0 : index
      %22 = vector.load %arg7[%c0_13, %c0_14] : memref<2x32xf32, #tpu.memory_space<vmem>>, vector<2x32xf32>
      %c0_15 = arith.constant 0 : index
      %c0_16 = arith.constant 0 : index
      %23 = vector.load %arg4[%c0_15, %c0_16] : memref<1x32xf32, #tpu.memory_space<vmem>>, vector<1x32xf32>
      %24 = vector.broadcast %23 : vector<1x32xf32> to vector<2x32xf32>
      %25 = arith.mulf %22, %24 : vector<2x32xf32>
      %cst_17 = arith.constant dense<0.000000e+00> : vector<2xf32>
      %26 = vector.multi_reduction <add>, %25, %cst_17 [1] : vector<2x32xf32> to vector<2xf32>
      %27 = vector.shape_cast %26 : vector<2xf32> to vector<2x1xf32>
      %c0_18 = arith.constant 0 : index
      %c0_19 = arith.constant 0 : index
      %28 = vector.load %arg5[%c0_18, %c0_19] : memref<1x1xf32, #tpu.memory_space<vmem>>, vector<1x1xf32>
      %29 = vector.broadcast %28 : vector<1x1xf32> to vector<2x1xf32>
      %30 = arith.addf %27, %29 : vector<2x1xf32>
      %31 = arith.negf %30 : vector<2x1xf32>
      %32 = math.exp %31 : vector<2x1xf32>
      %cst_20 = arith.constant 1.000000e+00 : f32
      %33 = vector.broadcast %cst_20 : f32 to vector<2x1xf32>
      %34 = arith.addf %33, %32 : vector<2x1xf32>
      %35 = arith.divf %33, %34 : vector<2x1xf32>
      %c0_21 = arith.constant 0 : index
      %c0_22 = arith.constant 0 : index
      %36 = vector.load %arg6[%c0_21, %c0_22] : memref<2x1xf32, #tpu.memory_space<vmem>>, vector<2x1xf32>
      tpu.vector_store %arg6[%c0_21, %c0_22], %35 {strides = array<i32>} : memref<2x1xf32, #tpu.memory_space<vmem>>, vector<2x1xf32>,
    } else {
    }
    return
  }
  func.func @transform_0(%arg0: i32, %arg1: i32) -> (i32, i32, i32) {
    %c0_i32 = arith.constant 0 : i32
    %c0_i32_0 = arith.constant 0 : i32
    return %arg1, %arg0, %c0_i32 : i32, i32, i32
  }
  func.func @transform_1(%arg0: i32, %arg1: i32) -> (i32, i32, i32) {
    %c0_i32 = arith.constant 0 : i32
    %c0_i32_0 = arith.constant 0 : i32
    return %arg1, %arg0, %c0_i32 : i32, i32, i32
  }
  func.func @transform_2(%arg0: i32, %arg1: i32) -> (i32, i32) {
    %c0_i32 = arith.constant 0 : i32
    %c0_i32_0 = arith.constant 0 : i32
    %c0_i32_1 = arith.constant 0 : i32
    return %c0_i32, %c0_i32_0 : i32, i32
  }
  func.func @transform_3(%arg0: i32, %arg1: i32) -> (i32, i32) {
    %c0_i32 = arith.constant 0 : i32
    %c0_i32_0 = arith.constant 0 : i32
    %c0_i32_1 = arith.constant 0 : i32
    return %c0_i32, %c0_i32_0 : i32, i32
  }
  func.func @transform_4(%arg0: i32, %arg1: i32) -> (i32, i32) {
    %c0_i32 = arith.constant 0 : i32
    %c0_i32_0 = arith.constant 0 : i32
    return %arg0, %c0_i32 : i32, i32
  }
}

</mosaic_0001>

<llo_original>
// kernel: tpu_custom_call.1
$region0: #{tpu_custom_call.1}
  #allocation0 [shape = 'u32[]', space=smem, size = 0x4, offset = 0x4, fixed_abs, tag = 'smem constant byte address 0x4 - core index']
  #allocation1 [shape = 'u32[144,128]{1,0:T(1,128)}', space=vmem, size = 0x12000, scoped, tag = 'internal scratch']
  #allocation2 [shape = 'f32[2,32]{1,0:T(2,128)}', space=vmem, size = 0x400, scoped, tag = 'scratch operand']
  #allocation3 [shape = 'f32[1,1]{1,0:T(1,128)S(1)}', space=vmem, size = 0x200, scoped, tag = 'scoped memory for tpu_custom_call.1']
  %s0 = inlined_call_operand.vmem [shape: f32[8,2,32], index: 0, kind: input, shape index: {}]
  %s1 = inlined_call_operand.vmem [shape: s32[8,2,1], index: 1, kind: input, shape index: {}]
  %s2 = inlined_call_operand.vmem [shape: f32[1,32], index: 2, kind: input, shape index: {}]
  %s3 = inlined_call_operand.<no memory space> [shape: f32[1,1], index: 3, kind: input, shape index: {}]
  %s4 = inlined_call_operand.vmem [shape: f32[2,1], index: 4, kind: output, shape index: {}]
  %s5 = sld [smem:[#allocation0]]
  $region34: #{tpu_custom_call.1} parent=0
    _
  %s7 = ssub.s32 1, %s5
  %s8 = scalar_select 0, %s7, %s5
  %v9 = vstv %s3
  %10 = vst [vmem:[#allocation3] sm:$0x1] %v9
  // Predicated region
  $region2: #{tpu_custom_call.1} parent=0 // pred_check
    _
  $region3: #{tpu_custom_call.1} parent=0 // pred_check_branch
    %12 = sbr.rel (0) target = $region5
  $region4: #{tpu_custom_call.1} parent=0 // pred_region
    _
  $region5: #{tpu_custom_call.1} parent=0 // pred_fallthru
    _
  // Predicated region
  $region6: #{tpu_custom_call.1} parent=0 // pred_check
    _
  $region7: #{tpu_custom_call.1} parent=0 // pred_check_branch
    %14 = sbr.rel (0) target = $region9
  $region8: #{tpu_custom_call.1} parent=0 // pred_region
    _
  $region9: #{tpu_custom_call.1} parent=0 // pred_fallthru
    _
  // Predicated region
  $region10: #{tpu_custom_call.1} parent=0 // pred_check
    _
  $region11: #{tpu_custom_call.1} parent=0 // pred_check_branch
    %16 = sbr.rel (0) target = $region13
  $region12: #{tpu_custom_call.1} parent=0 // pred_region
    _
  $region13: #{tpu_custom_call.1} parent=0 // pred_fallthru
    _
  // Predicated region
  $region14: #{tpu_custom_call.1} parent=0 // pred_check
    _
  $region15: #{tpu_custom_call.1} parent=0 // pred_check_branch
    %18 = sbr.rel (0) target = $region17
  $region16: #{tpu_custom_call.1} parent=0 // pred_region
    _
  $region17: #{tpu_custom_call.1} parent=0 // pred_fallthru
    _
  %p19 = scmp.eq.s32.totalorder 0, 0
  // Predicated region
  $region18: #{tpu_custom_call.1} parent=0 // pred_check
    %p20 = pneg %p19
  $region19: #{tpu_custom_call.1} parent=0 // pred_check_branch
    %22 = sbr.rel (%p20) target = $region21
  $region20: #{tpu_custom_call.1} parent=0 // pred_region
    %vm23 = vcmask 254976
    %24 = vst.msk [vmem:[#allocation2] sm:$0x3] %vm23, -1e+30
  $region21: #{tpu_custom_call.1} parent=0 // pred_fallthru
    _
  %v25 = vld [vmem:[#allocation2] sm:$0x3]
  %s26 = smul.u32 0, 2
  %s27 = scalar_lea.vmem %s0, %s26
  %v28 = vld [vmem:[%s27] sm:$0x3]
  %v29 = vld [vmem:[%s27 + $0x2] sm:$0x3]
  %v30 = vld [vmem:[%s27 + $0x4] sm:$0x3]
  %v31 = vld [vmem:[%s27 + $0x6] sm:$0x3]
  %v32 = vld [vmem:[%s27 + $0x8] sm:$0x3]
  %v33 = vld [vmem:[%s27 + $0xa] sm:$0x3]
  %v34 = vld [vmem:[%s27 + $0xc] sm:$0x3]
  %v35 = vld [vmem:[%s27 + $0xe] sm:$0x3]
  %s36 = scalar_lea.vmem %s1, %s26
  %v37 = vld [vmem:[%s36] sm:$0x3]
  %v38 = vld [vmem:[%s36 + $0x2] sm:$0x3]
  %v39 = vld [vmem:[%s36 + $0x4] sm:$0x3]
  %v40 = vld [vmem:[%s36 + $0x6] sm:$0x3]
  %v41 = vld [vmem:[%s36 + $0x8] sm:$0x3]
  %v42 = vld [vmem:[%s36 + $0xa] sm:$0x3]
  %v43 = vld [vmem:[%s36 + $0xc] sm:$0x3]
  %v44 = vld [vmem:[%s36 + $0xe] sm:$0x3]
  %vm45 = vcmp.eq.s32.totalorder %v37, 0
  %vm46 = vcmp.eq.s32.totalorder %v38, 0
  %vm47 = vcmp.eq.s32.totalorder %v39, 0
  %vm48 = vcmp.eq.s32.totalorder %v40, 0
  %vm49 = vcmp.eq.s32.totalorder %v41, 0
  %vm50 = vcmp.eq.s32.totalorder %v42, 0
  %vm51 = vcmp.eq.s32.totalorder %v43, 0
  %vm52 = vcmp.eq.s32.totalorder %v44, 0
  %v53 = vsel %vm45, 1, 0
  %v54 = vsel %vm46, 1, 0
  %v55 = vsel %vm47, 1, 0
  %v56 = vsel %vm48, 1, 0
  %v57 = vsel %vm49, 1, 0
  %v58 = vsel %vm50, 1, 0
  %v59 = vsel %vm51, 1, 0
  %v60 = vsel %vm52, 1, 0
  %61 = vset.pattern.permute.xlu0 0
  %62 = vperm.xlu0 %61, %v53
  %v63 = vpop.permute.xlu0 %62
  %64 = vset.pattern.permute.xlu0 0
  %65 = vperm.xlu0 %64, %v54
  %v66 = vpop.permute.xlu0 %65
  %67 = vset.pattern.permute.xlu0 0
  %68 = vperm.xlu0 %67, %v55
  %v69 = vpop.permute.xlu0 %68
  %70 = vset.pattern.permute.xlu0 0
  %71 = vperm.xlu0 %70, %v56
  %v72 = vpop.permute.xlu0 %71
  %73 = vset.pattern.permute.xlu0 0
  %74 = vperm.xlu0 %73, %v57
  %v75 = vpop.permute.xlu0 %74
  %76 = vset.pattern.permute.xlu0 0
  %77 = vperm.xlu0 %76, %v58
  %v78 = vpop.permute.xlu0 %77
  %79 = vset.pattern.permute.xlu0 0
  %80 = vperm.xlu0 %79, %v59
  %v81 = vpop.permute.xlu0 %80
  %82 = vset.pattern.permute.xlu0 0
  %83 = vperm.xlu0 %82, %v60
  %v84 = vpop.permute.xlu0 %83
  %vm85 = vcmp.eq.s32.totalorder %v63, 1
  %vm86 = vcmp.eq.s32.totalorder %v66, 1
  %vm87 = vcmp.eq.s32.totalorder %v69, 1
  %vm88 = vcmp.eq.s32.totalorder %v72, 1
  %vm89 = vcmp.eq.s32.totalorder %v75, 1
  %vm90 = vcmp.eq.s32.totalorder %v78, 1
  %vm91 = vcmp.eq.s32.totalorder %v81, 1
  %vm92 = vcmp.eq.s32.totalorder %v84, 1
  %v93 = vsel %vm85, %v28, -1e+30
  %v94 = vsel %vm86, %v29, -1e+30
  %v95 = vsel %vm87, %v30, -1e+30
  %v96 = vsel %vm88, %v31, -1e+30
  %v97 = vsel %vm89, %v32, -1e+30
  %v98 = vsel %vm90, %v33, -1e+30
  %v99 = vsel %vm91, %v34, -1e+30
  %v100 = vsel %vm92, %v35, -1e+30
  %vm101 = vcmask 254976
  %v102 = vsel %vm101, %v93, -inf
  %v103 = vsel %vm101, %v94, -inf
  %v104 = vsel %vm101, %v95, -inf
  %v105 = vsel %vm101, %v96, -inf
  %v106 = vsel %vm101, %v97, -inf
  %v107 = vmax.f32 %v102, %v106
  %v108 = vsel %vm101, %v98, -inf
  %v109 = vmax.f32 %v103, %v108
  %v110 = vsel %vm101, %v99, -inf
  %v111 = vmax.f32 %v104, %v110
  %v112 = vsel %vm101, %v100, -inf
  %v113 = vmax.f32 %v105, %v112
  %v114 = vmax.f32 %v107, %v109
  %v115 = vmax.f32 %v111, %v113
  %v116 = vmax.f32 %v114, %v115
  %v117 = vmax.f32 %v25, %v116
  %118 = vst.msk [vmem:[#allocation2] sm:$0x3] %vm101, %v117
  // Predicated region
  $region22: #{tpu_custom_call.1} parent=0 // pred_check
    %p119 = pneg %p19
  $region23: #{tpu_custom_call.1} parent=0 // pred_check_branch
    %121 = sbr.rel (%p119) target = $region25
  $region24: #{tpu_custom_call.1} parent=0 // pred_region
    %v122 = vld [vmem:[#allocation2] sm:$0x3]
    %v123 = vld [vmem:[%s2] sm:$0x1]
    %v125 = vlaneseq
    %v126 = vshrl.u32 %v125, 7
    %v127 = vsub.s32 0, %v126
    %v128 = vrot.slane %v123, %v127
    %v130 = vmul.f32 %v122, %v128
    %v131 = vsel %vm101, %v130, 0.0
    %132 = vadd.xlane.f32.xlu0 %v131
    %v133 = vpop.xlane.xlu0 %132
    %v134 = vld [vmem:[#allocation3] sm:$0x1]
    %v136 = vlaneseq
    %v137 = vshrl.u32 %v136, 7
    %v138 = vsub.s32 0, %v137
    %v139 = vrot.slane %v134, %v138
    %v141 = vadd.f32 %v133, %v139
    %v142 = vxor.u32 %v141, 2147483648
    %v143 = vmul.f32 %v142, 1.442695
    %v144 = vpow.pop %v143
    %v145 = vadd.f32 %v144, 1.0
    %v146 = vrcp.pop %v145
    %v147 = vmul.f32 1.0, %v146
    %vm148 = vcmask 1024
    %149 = vst.msk [vmem:[%s4] sm:$0x3] %vm148, %v147
  $region25: #{tpu_custom_call.1} parent=0 // pred_fallthru
    _
  // Predicated region
  $region26: #{tpu_custom_call.1} parent=0 // pred_check
    _
  $region27: #{tpu_custom_call.1} parent=0 // pred_check_branch
    %151 = sbr.rel (0) target = $region29
  $region28: #{tpu_custom_call.1} parent=0 // pred_region
    _
  $region29: #{tpu_custom_call.1} parent=0 // pred_fallthru
    _
  // Predicated region
  $region30: #{tpu_custom_call.1} parent=0 // pred_check
    _
  $region31: #{tpu_custom_call.1} parent=0 // pred_check_branch
    %153 = sbr.rel (0) target = $region33
  $region32: #{tpu_custom_call.1} parent=0 // pred_region
    _
  $region33: #{tpu_custom_call.1} parent=0 // pred_fallthru
    _

</llo_original>
